<compile_context>
chip_gen: v6e
topology: v6e:2x2x1
jax: 0.10.0
libtpu: 0.0.40
codegen_flags: <defaults>
</compile_context>

<pallas_src>
import functools

import jax
import jax.numpy as jnp
from jax.experimental import pallas as pl
from jax.experimental.pallas import tpu as pltpu


# ----------------------------------------------------------------------------
# Kernel
# ----------------------------------------------------------------------------
def _distmult_kernel(x_ref, wt_ref, out_ref):
    # x_ref  : (B, d)       bf16 -- grid-invariant query block (bn0(e1) * r)
    # wt_ref : (d, tile_e)  bf16 -- lane-dense entity-table tile (transposed)
    # out_ref: (B, tile_e)  bf16 -- score tile
    logits = jax.lax.dot_general(
        x_ref[...], wt_ref[...],
        dimension_numbers=(((1,), (0,)), ((), ())),   # [B,d] @ [d,tile_e]
        preferred_element_type=jnp.float32)
    # sigmoid(x) = 0.5*tanh(0.5*x) + 0.5 : single EUP transcendental per element.
    out_ref[...] = (0.5 * jnp.tanh(0.5 * logits) + 0.5).astype(out_ref.dtype)


# ----------------------------------------------------------------------------
# Tile sizing / table preparation (done once, outside the forward pass)
# ----------------------------------------------------------------------------
def _round_up(x, m):
    return ((x + m - 1) // m) * m


def _detect_num_tensorcores():
    """v7x has 2 TensorCores per chip sharing the 'parallel' grid axis."""
    try:
        kind = jax.devices()[0].device_kind.lower()
        if "v7" in kind:
            return 2
    except Exception:
        pass
    return 1


def choose_tile_e(num_entities, d, batch, *, vmem_budget_bytes=20 << 20,
                  max_tile=16384, num_cores=None):
    """Entity tile size (multiple of 128).

    Sized from a VMEM budget covering the double-buffered bf16 weight tile
    (d, tile_e) plus the double-buffered bf16 output block (B, tile_e).
    On multi-TensorCore chips (v7x) the tile is shrunk so the 'parallel'
    entity axis has >= 4 steps per core to shard evenly and pipeline.
    """
    if num_cores is None:
        num_cores = _detect_num_tensorcores()
    e_full = _round_up(num_entities, 128)
    bytes_per_col = 2 * (d + batch) * 2            # 2 buffers * bf16 * (weights + out)
    budget_tile = max(128, (vmem_budget_bytes // max(bytes_per_col, 1)) // 128 * 128)
    tile = int(min(max_tile, budget_tile, e_full))
    if num_cores > 1:
        target_steps = 4 * num_cores
        while tile > 128 and pl.cdiv(e_full, tile) < target_steps:
            tile -= 128
    return int(tile)


def prepare_entity_table(E_w, tile_e):
    """Build the streaming copy of the entity table ONCE at setup time:
    bf16, transposed to [d, E_pad] (lane-dense tiles), zero-padded so the
    entity count is a multiple of tile_e. Pad columns score sigmoid(0)=0.5 and
    are sliced off by the forward pass."""
    num_entities, _ = E_w.shape
    e_pad = _round_up(num_entities, tile_e)
    wt = jnp.transpose(E_w.astype(jnp.bfloat16))         # [d, E]
    if e_pad != num_entities:
        wt = jnp.pad(wt, ((0, 0), (0, e_pad - num_entities)))
    return wt


# ----------------------------------------------------------------------------
# Forward pass
# ----------------------------------------------------------------------------
@functools.partial(jax.jit, static_argnames=("tile_e",))
def distmult_forward(e1_idx, r_idx, params, wt, *, tile_e):
    eps = 1e-5

    # Embedding lookups (glue, plain JAX gather).
    e1 = params["E"][e1_idx]
    r = params["R"][r_idx]

    # Eval-mode BatchNorm1d folded into per-feature scale/shift, fused with the
    # DistMult elementwise product; grid-invariant, so computed once here and
    # passed to the kernel already in bf16.
    s = params["bn0_gamma"] * jax.lax.rsqrt(params["bn0_var"] + eps)
    b = params["bn0_beta"] - params["bn0_mean"] * s
    x = ((e1 * s + b) * r).astype(jnp.bfloat16)
    # TODO(synk): inp_drop is identity at inference; training-mode dropout and
    # batch-statistic BatchNorm are not emitted (inference-only path).

    B, d = x.shape
    d_w, E_pad = wt.shape
    assert d_w == d and E_pad % tile_e == 0
    n_tiles = E_pad // tile_e
    num_entities = params["E"].shape[0]

    out = pl.pallas_call(
        _distmult_kernel,
        out_shape=jax.ShapeDtypeStruct((B, E_pad), jnp.bfloat16),
        grid_spec=pltpu.PrefetchScalarGridSpec(
            num_scalar_prefetch=0,
            grid=(n_tiles,),
            in_specs=[
                pl.BlockSpec((B, d), lambda j: (0, 0)),        # query block (resident)
                pl.BlockSpec((d, tile_e), lambda j: (0, j)),   # lane-dense weight tile
            ],
            out_specs=pl.BlockSpec((B, tile_e), lambda j: (0, j)),
        ),
        compiler_params=pltpu.CompilerParams(
            dimension_semantics=("parallel",),
            vmem_limit_bytes=32 * 1024 * 1024),
    )(x, wt)

    # TODO(synk): if B grows beyond a few hundred, add a batch grid axis
    # (block 128/256) outer-entity / inner-batch to reuse each streamed tile.
    return out[:, :num_entities]


# ----------------------------------------------------------------------------
# Parameters & pure-JAX reference
# ----------------------------------------------------------------------------
def init_params(key, num_entities, num_relations, d1, d2):
    """Deterministic parameter init mirroring DistMult.__init__ + .init()."""
    k = jax.random.split(key, 2)

    def xavier_normal(kk, shape):
        fan_out, fan_in = shape
        std = (2.0 / (fan_in + fan_out)) ** 0.5
        w = std * jax.random.normal(kk, shape, dtype=jnp.float32)
        # padding_idx=0 -> keep row 0 zero (Embedding padding semantics)
        return w.at[0].set(0.0)

    return {
        "E": xavier_normal(k[0], (num_entities, d1)),
        "R": xavier_normal(k[1], (num_relations, d2)),
        # BatchNorm1d(d1) defaults: gamma=1, beta=0, running stats (0, 1).
        "bn0_gamma": jnp.ones((d1,), jnp.float32),
        "bn0_beta": jnp.zeros((d1,), jnp.float32),
        "bn0_mean": jnp.zeros((d1,), jnp.float32),
        "bn0_var": jnp.ones((d1,), jnp.float32),
    }


def reference_forward(e1_idx, r_idx, params):
    """Pure-JAX f32 reference for correctness checking."""
    eps = 1e-5
    e1 = params["E"][e1_idx]
    r = params["R"][r_idx]
    e1 = (e1 - params["bn0_mean"]) / jnp.sqrt(params["bn0_var"] + eps) \
         * params["bn0_gamma"] + params["bn0_beta"]
    pred = jnp.dot(e1 * r, params["E"].T)
    return jax.nn.sigmoid(pred)


# ----------------------------------------------------------------------------
# Demo
# ----------------------------------------------------------------------------
if __name__ == "__main__":
    # Small synthetic sizes; NUM_ENTITIES deliberately not a multiple of 128
    # to exercise the padded last tile. BATCH is a multiple of 16 (bf16 packing).
    NUM_ENTITIES = 300
    NUM_RELATIONS = 16
    D1 = D2 = 32
    BATCH = 16

    key = jax.random.PRNGKey(0)
    kp, ke, kr = jax.random.split(key, 3)
    params = init_params(kp, NUM_ENTITIES, NUM_RELATIONS, D1, D2)

    # One-time setup: pick the entity tile and build the streaming (bf16,
    # transposed, padded) copy of the entity table.
    tile_e = choose_tile_e(NUM_ENTITIES, D1, BATCH)
    wt = jax.block_until_ready(prepare_entity_table(params["E"], tile_e))

    e1_idx = jax.random.randint(ke, (BATCH,), 0, NUM_ENTITIES, dtype=jnp.int32)
    r_idx = jax.random.randint(kr, (BATCH,), 0, NUM_RELATIONS, dtype=jnp.int32)

    pred = distmult_forward(e1_idx, r_idx, params, wt, tile_e=tile_e)
    pred = jax.block_until_ready(pred)

    ref = reference_forward(e1_idx, r_idx, params)
    assert pred.shape == (BATCH, NUM_ENTITIES)
    assert bool(jnp.all(jnp.isfinite(pred)))
    # bf16 query/weights/output -> loosened tolerance on sigmoid outputs.
    err = float(jnp.max(jnp.abs(pred.astype(jnp.float32) - ref)))
    assert err < 1.5e-2, err

    print("KERNEL_OK")
</pallas_src>

<mosaic_0001>
module attributes {stable_mosaic.version = 11 : i64} {
  func.func @_distmult_kernel(%arg0: i32, %arg1: memref<16x32xbf16, #tpu.memory_space<vmem>>, %arg2: memref<32x384xbf16, #tpu.memory_space<vmem>>, %arg3: memref<16x384xbf16, #tpu.memory_space<vmem>>) attributes {dimension_semantics = [#tpu.dimension_semantics<parallel>], iteration_bounds = array<i64: 1>, scalar_prefetch = 0 : i64, scratch_operands = 0 : i64, tpu.core_type = #tpu.core_type<tc>, window_params = [{pipeline_mode = #tpu.pipeline_mode<synchronous>, transform_indices = @transform_0, window_bounds = array<i64: 16, 32>}, {transform_indices = @transform_1, window_bounds = array<i64: 32, 384>}, {transform_indices = @transform_2, window_bounds = array<i64: 16, 384>}]} {
    %c0 = arith.constant 0 : index
    %c0_0 = arith.constant 0 : index
    %0 = vector.load %arg1[%c0, %c0_0] : memref<16x32xbf16, #tpu.memory_space<vmem>>, vector<16x32xbf16>
    %c0_1 = arith.constant 0 : index
    %c0_2 = arith.constant 0 : index
    %1 = vector.load %arg2[%c0_1, %c0_2] : memref<32x384xbf16, #tpu.memory_space<vmem>>, vector<32x384xbf16>
    %cst = arith.constant dense<0.000000e+00> : vector<16x384xf32>
    %2 = tpu.matmul %0, %1, %cst {dimension_numbers = #tpu.dot_dimension_numbers<[1], [0], [0], [1], [0, 0, 1, 1], [], []>} : vector<16x32xbf16>, vector<32x384xbf16>, vector<16x384xf32> -> vector<16x384xf32>
    %cst_3 = arith.constant 5.000000e-01 : f32
    %3 = vector.broadcast %cst_3 : f32 to vector<16x384xf32>
    %4 = arith.mulf %3, %2 : vector<16x384xf32>
    %5 = math.tanh %4 : vector<16x384xf32>
    %cst_4 = arith.constant 5.000000e-01 : f32
    %6 = vector.broadcast %cst_4 : f32 to vector<16x384xf32>
    %7 = arith.mulf %6, %5 : vector<16x384xf32>
    %cst_5 = arith.constant 5.000000e-01 : f32
    %8 = vector.broadcast %cst_5 : f32 to vector<16x384xf32>
    %9 = arith.addf %7, %8 : vector<16x384xf32>
    %10 = arith.truncf %9 : vector<16x384xf32> to vector<16x384xbf16>
    %c0_6 = arith.constant 0 : index
    %c0_7 = arith.constant 0 : index
    %11 = vector.load %arg3[%c0_6, %c0_7] : memref<16x384xbf16, #tpu.memory_space<vmem>>, vector<16x384xbf16>
    tpu.vector_store %arg3[%c0_6, %c0_7], %10 {strides = array<i32>} : memref<16x384xbf16, #tpu.memory_space<vmem>>, vector<16x384xbf16>,
    return
  }
  func.func @transform_0(%arg0: i32) -> (i32, i32) {
    %c0_i32 = arith.constant 0 : i32
    %c0_i32_0 = arith.constant 0 : i32
    %c0_i32_1 = arith.constant 0 : i32
    return %c0_i32, %c0_i32_0 : i32, i32
  }
  func.func @transform_1(%arg0: i32) -> (i32, i32) {
    %c0_i32 = arith.constant 0 : i32
    %c0_i32_0 = arith.constant 0 : i32
    return %c0_i32, %arg0 : i32, i32
  }
  func.func @transform_2(%arg0: i32) -> (i32, i32) {
    %c0_i32 = arith.constant 0 : i32
    %c0_i32_0 = arith.constant 0 : i32
    return %c0_i32, %arg0 : i32, i32
  }
}

</mosaic_0001>

<llo_original>
// kernel: distmult_forward.1
$region0: #{distmult_forward.1}
  #allocation0 [shape = 'u32[]', space=smem, size = 0x4, offset = 0x4, fixed_abs, tag = 'smem constant byte address 0x4 - core index']
  #allocation1 [shape = 'u32[144,128]{1,0:T(1,128)}', space=vmem, size = 0x12000, scoped, tag = 'internal scratch']
  %s0 = inlined_call_operand.vmem [shape: bf16[16,32], index: 0, kind: input, shape index: {}]
  %s1 = inlined_call_operand.vmem [shape: bf16[32,384], index: 1, kind: input, shape index: {}]
  %s2 = inlined_call_operand.hbm [shape: bf16[16,384], index: 2, kind: output, shape index: {}]
  %s3 = sld [smem:[#allocation0]]
  $region18: #{distmult_forward.1} parent=0
    _
  %s5 = ssub.s32 1, %s3
  %s6 = scalar_select 0, %s5, %s3
  $region1: #{distmult_forward.1} parent=0
    #allocation2 [shape = 'u8[12288]{0}', space=vmem, size = 0x3000, scoped, tag = 'output window, operand 0, single buffered']
    #allocation3 [shape = 's32[1]{0}', space=sflag, size = 0x4, scoped, tag = 'scoped memory for distmult_forward.1']
    %7 = vsyncpa [#allocation3], 0
    // Predicated region
    $region2: #{distmult_forward.1} parent=1 // pred_check
      _
    $region3: #{distmult_forward.1} parent=1 // pred_check_branch
      %9 = sbr.rel (0) target = $region5
    $region4: #{distmult_forward.1} parent=1 // pred_region
      _
    $region5: #{distmult_forward.1} parent=1 // pred_fallthru
      _
    // Predicated region
    $region6: #{distmult_forward.1} parent=1 // pred_check
      _
    $region7: #{distmult_forward.1} parent=1 // pred_check_branch
      %11 = sbr.rel (0) target = $region9
    $region8: #{distmult_forward.1} parent=1 // pred_region
      _
    $region9: #{distmult_forward.1} parent=1 // pred_fallthru
      _
    %v13 = vld [vmem:[%s0] sm:$0xf]
    %v14 = vld [vmem:[%s0 + $0x4] sm:$0xf]
    %v15 = vld [vmem:[%s1] sm:$0xff]
    %v16 = vld [vmem:[%s1 + $0x8] sm:$0xf]
    %v17 = vld [vmem:[%s1 + $0xc] sm:$0xff]
    %v18 = vld [vmem:[%s1 + $0x14] sm:$0xf]
    %v19 = vld [vmem:[%s1 + $0x18] sm:$0xff]
    %v20 = vld [vmem:[%s1 + $0x20] sm:$0xf]
    %v21 = vld [vmem:[%s1 + $0x24] sm:$0xff]
    %v22 = vld [vmem:[%s1 + $0x2c] sm:$0xf]
    %v25 = vunpack.c.l.b16 %v13
    %v26 = vunpack.c.l.b16 %v14
    %v27 = vpack.c.b16 %v26, %v25
    %v36 = vunpack.c.l.b16 %v15
    %v37 = vunpack.c.h.b16 %v15
    %v38 = vunpack.c.l.b16 %v16
    %v39 = vunpack.c.l.b16 %v17
    %v40 = vunpack.c.h.b16 %v17
    %v41 = vunpack.c.l.b16 %v18
    %v42 = vunpack.c.l.b16 %v19
    %v43 = vunpack.c.h.b16 %v19
    %v44 = vunpack.c.l.b16 %v20
    %v45 = vunpack.c.l.b16 %v21
    %v46 = vunpack.c.h.b16 %v21
    %v47 = vunpack.c.l.b16 %v22
    %v48 = vpack.c.b16 %v39, %v36
    %v49 = vpack.c.b16 %v40, %v37
    %v50 = vpack.c.b16 %v41, %v38
    %v51 = vpack.c.b16 %v45, %v42
    %v52 = vpack.c.b16 %v46, %v43
    %v53 = vpack.c.b16 %v47, %v44
    %vm60 = vcmask 261120
    %v62 = vsel %vm60, %v27, 0
    %64 = vmatprep.subr.bf16.mxu0 0
    %65 = vmatpush1.bf16.msra.mxu0 0
    %66 = vmatprep.subr.bf16.mxu0 0
    %67 = vmatpush1.bf16.msra.mxu0 0
    %68 = vmatprep.subr.bf16.mxu0 0
    %69 = vmatpush1.bf16.msra.mxu0 0
    %70 = vmatprep.subr.bf16.mxu0 0
    %71 = vmatpush1.bf16.msra.mxu0 0
    %72 = vmatprep.subr.bf16.mxu0 0
    %73 = vmatpush1.bf16.msra.mxu0 0
    %74 = vmatprep.subr.bf16.mxu0 0
    %75 = vmatpush1.bf16.msra.mxu0 0
    %76 = vmatprep.subr.bf16.mxu0 %v52
    %77 = vmatpush1.bf16.msra.mxu0 %v51
    %78 = vmatprep.subr.bf16.mxu0 %v49
    %79 = vmatpush1.bf16.msra.mxu0 %v48
    %80 = vmatprep.subr.bf16.mxu0 0
    %81 = vmatpush2.bf16.msra.mxu0 0
    %82 = vmatprep.subr.bf16.mxu0 0
    %83 = vmatpush2.bf16.msra.mxu0 0
    %84 = vmatprep.subr.bf16.mxu0 0
    %85 = vmatpush2.bf16.msra.mxu0 0
    %86 = vmatprep.subr.bf16.mxu0 0
    %87 = vmatpush2.bf16.msra.mxu0 0
    %88 = vmatprep.subr.bf16.mxu0 0
    %89 = vmatpush2.bf16.msra.mxu0 0
    %90 = vmatprep.subr.bf16.mxu0 0
    %91 = vmatpush2.bf16.msra.mxu0 0
    %92 = vmatprep.subr.bf16.mxu0 0
    %93 = vmatpush2.bf16.msra.mxu0 0
    %94 = vmatprep.subr.bf16.mxu0 0
    %95 = vmatpush2.bf16.msra.mxu0 0
    %96 = vmatprep.mubr.bf16.mxu0 0
    %97 = vmatmul.mubr.bf16.gmra.mxu0 %v62
    %v98 = vpop.f32.mrf.mxu0
    %v99 = vadd.f32 0.0, %v98
    %v100 = vpop.f32.mrf.mxu0
    %v101 = vadd.f32 0.0, %v100
    %v102 = vpop.f32.mrf.mxu0
    %v103 = vadd.f32 0.0, %v102
    %v104 = vpop.f32.mrf.mxu0
    %v105 = vadd.f32 0.0, %v104
    %106 = vdwg.mxu0
    %107 = vmatprep.subr.bf16.mxu0 0
    %108 = vmatpush1.bf16.msra.mxu0 0
    %109 = vmatprep.subr.bf16.mxu0 0
    %110 = vmatpush1.bf16.msra.mxu0 0
    %111 = vmatprep.subr.bf16.mxu0 0
    %112 = vmatpush1.bf16.msra.mxu0 0
    %113 = vmatprep.subr.bf16.mxu0 0
    %114 = vmatpush1.bf16.msra.mxu0 0
    %115 = vmatprep.subr.bf16.mxu0 0
    %116 = vmatpush1.bf16.msra.mxu0 0
    %117 = vmatprep.subr.bf16.mxu0 0
    %118 = vmatpush1.bf16.msra.mxu0 0
    %119 = vmatprep.subr.bf16.mxu0 0
    %120 = vmatpush1.bf16.msra.mxu0 %v53
    %121 = vmatprep.subr.bf16.mxu0 0
    %122 = vmatpush1.bf16.msra.mxu0 %v50
    %123 = vmatprep.subr.bf16.mxu0 0
    %124 = vmatpush2.bf16.msra.mxu0 0
    %125 = vmatprep.subr.bf16.mxu0 0
    %126 = vmatpush2.bf16.msra.mxu0 0
    %127 = vmatprep.subr.bf16.mxu0 0
    %128 = vmatpush2.bf16.msra.mxu0 0
    %129 = vmatprep.subr.bf16.mxu0 0
    %130 = vmatpush2.bf16.msra.mxu0 0
    %131 = vmatprep.subr.bf16.mxu0 0
    %132 = vmatpush2.bf16.msra.mxu0 0
    %133 = vmatprep.subr.bf16.mxu0 0
    %134 = vmatpush2.bf16.msra.mxu0 0
    %135 = vmatprep.subr.bf16.mxu0 0
    %136 = vmatpush2.bf16.msra.mxu0 0
    %137 = vmatprep.subr.bf16.mxu0 0
    %138 = vmatpush2.bf16.msra.mxu0 0
    %139 = vmatprep.mubr.bf16.mxu0 0
    %140 = vmatmul.mubr.bf16.gmra.mxu0 %v62
    %v141 = vpop.f32.mrf.mxu0
    %v142 = vadd.f32 0.0, %v141
    %v143 = vpop.f32.mrf.mxu0
    %v144 = vpop.f32.mrf.mxu0
    %v145 = vadd.f32 0.0, %v144
    %v146 = vpop.f32.mrf.mxu0
    %147 = vdwg.mxu0
    %v148 = vmul.f32 %v99, 0.5
    %v149 = vmul.f32 %v101, 0.5
    %v150 = vmul.f32 %v142, 0.5
    %v151 = vmul.f32 %v103, 0.5
    %v152 = vmul.f32 %v105, 0.5
    %v153 = vmul.f32 %v145, 0.5
    %v154 = vtanh.pop %v148
    %v155 = vtanh.pop %v149
    %v156 = vtanh.pop %v150
    %v157 = vtanh.pop %v151
    %v158 = vtanh.pop %v152
    %v159 = vtanh.pop %v153
    %v160 = vmul.f32 %v154, 0.5
    %v161 = vmul.f32 %v155, 0.5
    %v162 = vmul.f32 %v156, 0.5
    %v163 = vmul.f32 %v157, 0.5
    %v164 = vmul.f32 %v158, 0.5
    %v165 = vmul.f32 %v159, 0.5
    %v166 = vadd.f32 %v160, 0.5
    %v167 = vadd.f32 %v161, 0.5
    %v168 = vadd.f32 %v162, 0.5
    %v169 = vadd.f32 %v163, 0.5
    %v170 = vadd.f32 %v164, 0.5
    %v171 = vadd.f32 %v165, 0.5
    %v172 = vpack.c.bf16 %v169, %v166
    %v173 = vpack.c.bf16 %v170, %v167
    %v174 = vpack.c.bf16 %v171, %v168
    %v178 = vunpack.c.l.b16 %v172
    %v179 = vunpack.c.l.b16 %v173
    %v180 = vunpack.c.l.b16 %v174
    %v181 = vunpack.c.h.b16 %v172
    %v182 = vunpack.c.h.b16 %v173
    %v183 = vunpack.c.h.b16 %v174
    %v184 = vpack.c.b16 %v179, %v178
    %v185 = vpack.c.b16 %v180, %v180
    %v186 = vpack.c.b16 %v182, %v181
    %v187 = vpack.c.b16 %v183, %v183
    %192 = vst [vmem:[#allocation2] sm:$0xff] %v184
    %193 = vst [vmem:[#allocation2 + $0x8] sm:$0xf] %v185
    %194 = vst [vmem:[#allocation2 + $0xc] sm:$0xff] %v186
    %195 = vst [vmem:[#allocation2 + $0x14] sm:$0xf] %v187
    // Predicated region
    $region10: #{distmult_forward.1} parent=1 // pred_check
      _
    $region11: #{distmult_forward.1} parent=1 // pred_check_branch
      %197 = sbr.rel (0) target = $region13
    $region12: #{distmult_forward.1} parent=1 // pred_region
      %s199 = ssub.s32 384, 384
      %200 = vsyncadd [#allocation3], %s199
      %s201 = sshll.u32 [#allocation2], 4
      %s202 = int_to_ptr.vmem [resolvable:$true] %s201
      %207 = dma.vmem_to_hbm [thread:$0]  %s202, 384, %s2, [#allocation3], 192, 192, 12
    $region13: #{distmult_forward.1} parent=1 // pred_fallthru
      _
    // Predicated region
    $region14: #{distmult_forward.1} parent=1 // pred_check
      _
    $region15: #{distmult_forward.1} parent=1 // pred_check_branch
      %209 = sbr.rel (0) target = $region17
    $region16: #{distmult_forward.1} parent=1 // pred_region
      %210 = dma.done [#allocation3], 384
    $region17: #{distmult_forward.1} parent=1 // pred_fallthru
      _
    %211 = vsyncpa [#allocation3], 1

</llo_original>
